<compile_context>
chip_gen: v7x
topology: tpu7x:2x2x1
jax: 0.10.0
libtpu: 0.0.40
codegen_flags: <defaults>
</compile_context>

<pallas_src>
import functools
import math

import jax
import jax.numpy as jnp
from jax.experimental import pallas as pl
from jax.experimental.pallas import tpu as pltpu


def _mha3_kernel(q_ref, k_ref, v_ref, o_ref, *, num_heads):
    """One invocation computes every head.

    q_ref: (T*N, D)  queries, row-major flatten of (T, N, D)
    k_ref: (M, D)    shared keys   (the module's key.view(1, M, H, Dh))
    v_ref: (M, D)    shared values
    o_ref: (T*N, D)  lane-dense output slab
    """
    TN, D = q_ref.shape
    H = num_heads
    Dh = D // H
    scale = 1.0 / math.sqrt(Dh)

    # Scale once on the lane-dense query tile (cheaper than scaling the
    # (H, TN, M) score tensor and mathematically identical).
    q = q_ref[...].astype(jnp.float32) * scale   # (TN, D)
    k = k_ref[...].astype(jnp.float32)           # (M, D)
    v = v_ref[...].astype(jnp.float32)           # (M, D)

    # Split heads with static lane slices stacked along a new leading batch
    # dim -> (H, rows, Dh). The head axis stays a plain leading/batch dim, so
    # the two contractions below issue as single batched MXU sequences.
    def split_heads(x):
        return jnp.stack([x[:, h * Dh:(h + 1) * Dh] for h in range(H)], axis=0)

    qh = split_heads(q)   # (H, TN, Dh)
    kh = split_heads(k)   # (H, M,  Dh)
    vh = split_heads(v)   # (H, M,  Dh)

    # Scores for all heads in ONE batched contraction: (H, TN, M).
    s = jax.lax.dot_general(
        qh, kh,
        dimension_numbers=(((2,), (2,)), ((0,), (0,))),
        preferred_element_type=jnp.float32,
    )

    # Softmax over keys (MultiHeadAttention3.forward applies no mask).
    s = s - jnp.max(s, axis=-1, keepdims=True)
    p = jnp.exp(s)
    p = p * pl.reciprocal(jnp.sum(p, axis=-1, keepdims=True), approx=True)

    # Attention output for all heads in ONE batched contraction: (H, TN, Dh).
    y = jax.lax.dot_general(
        p, vh,
        dimension_numbers=(((2,), (1,)), ((0,), (0,))),
        preferred_element_type=jnp.float32,
    )

    # Merge heads back into the feature axis and do a single full-width store.
    o = jnp.concatenate([y[h] for h in range(H)], axis=-1)   # (TN, D)
    o_ref[...] = o.astype(o_ref.dtype)


def mha3_pallas(query, key, value, num_heads):
    """Pallas equivalent of MultiHeadAttention3.forward.

    query: (T, N, D); key/value: (1, M, D). Returns (T, N, D).
    """
    T, N, D = query.shape
    assert D % num_heads == 0, "hidden_dim must be divisible by num_heads"
    M = key.shape[1]
    assert key.shape == (1, M, D) and value.shape == (1, M, D)

    TN = T * N
    H = num_heads
    Dh = D // H

    # Free row-major reshapes only (no data movement, no HBM transposes).
    q2 = query.reshape(TN, D)
    k2 = key.reshape(M, D)
    v2 = value.reshape(M, D)

    itemsize = jnp.dtype(query.dtype).itemsize
    cost = pl.CostEstimate(
        flops=2 * H * TN * M * Dh      # QK^T
              + 2 * H * TN * M * Dh    # PV
              + 5 * H * TN * M,        # softmax elementwise
        transcendentals=H * TN * M,    # exp
        bytes_accessed=(TN * D + 2 * M * D + TN * D) * itemsize,
    )

    kernel = functools.partial(_mha3_kernel, num_heads=num_heads)
    out2 = pl.pallas_call(
        kernel,
        out_shape=jax.ShapeDtypeStruct((TN, D), query.dtype),
        grid=(1,),  # single step: whole problem fits in VMEM; all heads fused
        in_specs=[
            pl.BlockSpec((TN, D), lambda i: (0, 0)),
            pl.BlockSpec((M, D), lambda i: (0, 0)),
            pl.BlockSpec((M, D), lambda i: (0, 0)),
        ],
        out_specs=pl.BlockSpec((TN, D), lambda i: (0, 0)),
        compiler_params=pltpu.CompilerParams(
            # Trivial single-step grid: do not shard it across TensorCores.
            dimension_semantics=("arbitrary",),
        ),
        cost_estimate=cost,
    )(q2, k2, v2)

    return out2.reshape(T, N, D)


def _reference_jax(query, key, value, num_heads):
    """Pure-JAX mirror of the PyTorch MultiHeadAttention3.forward."""
    T, N, D = query.shape
    H = num_heads
    Dh = D // H
    q = jnp.transpose(query.reshape(T, N, H, Dh), (0, 2, 1, 3))              # (T,H,N,Dh)
    k = jnp.transpose(key.reshape(1, key.shape[1], H, Dh), (0, 2, 1, 3))     # (1,H,M,Dh)
    v = jnp.transpose(value.reshape(1, value.shape[1], H, Dh), (0, 2, 1, 3))
    att = jnp.matmul(q, jnp.swapaxes(k, -1, -2)) * (1.0 / math.sqrt(Dh))     # (T,H,N,M)
    att = jax.nn.softmax(att, axis=-1)
    y = jnp.matmul(att, v)                                                   # (T,H,N,Dh)
    return jnp.transpose(y, (0, 2, 1, 3)).reshape(T, N, D)


if __name__ == "__main__":
    hidden_dim = 32
    num_heads = 4
    T, N, M = 8, 4, 6   # time steps, query agents, shared key/value entries

    root = jax.random.PRNGKey(0)
    kq, kk, kv = jax.random.split(root, 3)
    query = jax.random.normal(kq, (T, N, hidden_dim), dtype=jnp.float32)
    key = jax.random.normal(kk, (1, M, hidden_dim), dtype=jnp.float32)
    value = jax.random.normal(kv, (1, M, hidden_dim), dtype=jnp.float32)

    fwd = jax.jit(functools.partial(mha3_pallas, num_heads=num_heads))
    out = jax.block_until_ready(fwd(query, key, value))

    ref = _reference_jax(query, key, value, num_heads)
    assert out.shape == (T, N, hidden_dim)
    # Tolerance at bf16-ish level because the softmax denominator uses the
    # EUP approximate reciprocal (pl.reciprocal(..., approx=True)).
    max_err = float(jnp.max(jnp.abs(out - ref)))
    assert jnp.allclose(out, ref, atol=2e-3, rtol=2e-3), (
        f"mismatch vs reference (max abs err={max_err})")
    print("KERNEL_OK")
</pallas_src>

<mosaic_0001>
module attributes {stable_mosaic.version = 11 : i64} {
  func.func @_mha3_kernel(%arg0: i32, %arg1: memref<32x32xf32, #tpu.memory_space<vmem>>, %arg2: memref<6x32xf32, #tpu.memory_space<vmem>>, %arg3: memref<6x32xf32, #tpu.memory_space<vmem>>, %arg4: memref<32x32xf32, #tpu.memory_space<vmem>>) attributes {dimension_semantics = [#tpu.dimension_semantics<arbitrary>], iteration_bounds = array<i64: 1>, scalar_prefetch = 0 : i64, scratch_operands = 0 : i64, tpu.core_type = #tpu.core_type<tc>, window_params = [{pipeline_mode = #tpu.pipeline_mode<synchronous>, transform_indices = @transform_0, window_bounds = array<i64: 32, 32>}, {pipeline_mode = #tpu.pipeline_mode<synchronous>, transform_indices = @transform_1, window_bounds = array<i64: 6, 32>}, {pipeline_mode = #tpu.pipeline_mode<synchronous>, transform_indices = @transform_2, window_bounds = array<i64: 6, 32>}, {pipeline_mode = #tpu.pipeline_mode<synchronous>, transform_indices = @transform_3, window_bounds = array<i64: 32, 32>}]} {
    %c0 = arith.constant 0 : index
    %c0_0 = arith.constant 0 : index
    %0 = vector.load %arg1[%c0, %c0_0] : memref<32x32xf32, #tpu.memory_space<vmem>>, vector<32x32xf32>
    %cst = arith.constant 0.353553385 : f32
    %1 = vector.broadcast %cst : f32 to vector<32x32xf32>
    %2 = arith.mulf %0, %1 : vector<32x32xf32>
    %c0_1 = arith.constant 0 : index
    %c0_2 = arith.constant 0 : index
    %3 = vector.load %arg2[%c0_1, %c0_2] : memref<6x32xf32, #tpu.memory_space<vmem>>, vector<6x32xf32>
    %c0_3 = arith.constant 0 : index
    %c0_4 = arith.constant 0 : index
    %4 = vector.load %arg3[%c0_3, %c0_4] : memref<6x32xf32, #tpu.memory_space<vmem>>, vector<6x32xf32>
    %5 = vector.extract_strided_slice %2 {offsets = [0, 0], sizes = [32, 8], strides = [1, 1]} : vector<32x32xf32> to vector<32x8xf32>
    %6 = vector.extract_strided_slice %2 {offsets = [0, 8], sizes = [32, 8], strides = [1, 1]} : vector<32x32xf32> to vector<32x8xf32>
    %7 = vector.extract_strided_slice %2 {offsets = [0, 16], sizes = [32, 8], strides = [1, 1]} : vector<32x32xf32> to vector<32x8xf32>
    %8 = vector.extract_strided_slice %2 {offsets = [0, 24], sizes = [32, 8], strides = [1, 1]} : vector<32x32xf32> to vector<32x8xf32>
    %9 = vector.shape_cast %5 : vector<32x8xf32> to vector<1x32x8xf32>
    %10 = vector.shape_cast %6 : vector<32x8xf32> to vector<1x32x8xf32>
    %11 = vector.shape_cast %7 : vector<32x8xf32> to vector<1x32x8xf32>
    %12 = vector.shape_cast %8 : vector<32x8xf32> to vector<1x32x8xf32>
    %13 = tpu.concatenate %9, %10, %11, %12 in 0 : vector<1x32x8xf32>, vector<1x32x8xf32>, vector<1x32x8xf32>, vector<1x32x8xf32> -> vector<4x32x8xf32>
    %14 = vector.extract_strided_slice %3 {offsets = [0, 0], sizes = [6, 8], strides = [1, 1]} : vector<6x32xf32> to vector<6x8xf32>
    %15 = vector.extract_strided_slice %3 {offsets = [0, 8], sizes = [6, 8], strides = [1, 1]} : vector<6x32xf32> to vector<6x8xf32>
    %16 = vector.extract_strided_slice %3 {offsets = [0, 16], sizes = [6, 8], strides = [1, 1]} : vector<6x32xf32> to vector<6x8xf32>
    %17 = vector.extract_strided_slice %3 {offsets = [0, 24], sizes = [6, 8], strides = [1, 1]} : vector<6x32xf32> to vector<6x8xf32>
    %18 = vector.shape_cast %14 : vector<6x8xf32> to vector<1x6x8xf32>
    %19 = vector.shape_cast %15 : vector<6x8xf32> to vector<1x6x8xf32>
    %20 = vector.shape_cast %16 : vector<6x8xf32> to vector<1x6x8xf32>
    %21 = vector.shape_cast %17 : vector<6x8xf32> to vector<1x6x8xf32>
    %22 = tpu.concatenate %18, %19, %20, %21 in 0 : vector<1x6x8xf32>, vector<1x6x8xf32>, vector<1x6x8xf32>, vector<1x6x8xf32> -> vector<4x6x8xf32>
    %23 = vector.extract_strided_slice %4 {offsets = [0, 0], sizes = [6, 8], strides = [1, 1]} : vector<6x32xf32> to vector<6x8xf32>
    %24 = vector.extract_strided_slice %4 {offsets = [0, 8], sizes = [6, 8], strides = [1, 1]} : vector<6x32xf32> to vector<6x8xf32>
    %25 = vector.extract_strided_slice %4 {offsets = [0, 16], sizes = [6, 8], strides = [1, 1]} : vector<6x32xf32> to vector<6x8xf32>
    %26 = vector.extract_strided_slice %4 {offsets = [0, 24], sizes = [6, 8], strides = [1, 1]} : vector<6x32xf32> to vector<6x8xf32>
    %27 = vector.shape_cast %23 : vector<6x8xf32> to vector<1x6x8xf32>
    %28 = vector.shape_cast %24 : vector<6x8xf32> to vector<1x6x8xf32>
    %29 = vector.shape_cast %25 : vector<6x8xf32> to vector<1x6x8xf32>
    %30 = vector.shape_cast %26 : vector<6x8xf32> to vector<1x6x8xf32>
    %31 = tpu.concatenate %27, %28, %29, %30 in 0 : vector<1x6x8xf32>, vector<1x6x8xf32>, vector<1x6x8xf32>, vector<1x6x8xf32> -> vector<4x6x8xf32>
    %cst_5 = arith.constant dense<0.000000e+00> : vector<4x32x6xf32>
    %32 = tpu.matmul %13, %22, %cst_5 {dimension_numbers = #tpu.dot_dimension_numbers<[2], [2], [1], [1], [0, 0, 0, 1, 1, 1], [0], [0]>} : vector<4x32x8xf32>, vector<4x6x8xf32>, vector<4x32x6xf32> -> vector<4x32x6xf32>
    %cst_6 = arith.constant dense<0xFF800000> : vector<4x32xf32>
    %33 = vector.multi_reduction <maximumf>, %32, %cst_6 [2] : vector<4x32x6xf32> to vector<4x32xf32>
    %34 = vector.shape_cast %33 : vector<4x32xf32> to vector<4x32x1xf32>
    %35 = vector.broadcast %34 : vector<4x32x1xf32> to vector<4x32x6xf32>
    %36 = arith.subf %32, %35 : vector<4x32x6xf32>
    %37 = math.exp %36 : vector<4x32x6xf32>
    %cst_7 = arith.constant dense<0.000000e+00> : vector<4x32xf32>
    %38 = vector.multi_reduction <add>, %37, %cst_7 [2] : vector<4x32x6xf32> to vector<4x32xf32>
    %39 = vector.shape_cast %38 : vector<4x32xf32> to vector<4x32x1xf32>
    %40 = tpu.reciprocal %39 {approx = true} : vector<4x32x1xf32> -> vector<4x32x1xf32>
    %41 = vector.broadcast %40 : vector<4x32x1xf32> to vector<4x32x6xf32>
    %42 = arith.mulf %37, %41 : vector<4x32x6xf32>
    %cst_8 = arith.constant dense<0.000000e+00> : vector<4x32x8xf32>
    %43 = tpu.matmul %42, %31, %cst_8 {dimension_numbers = #tpu.dot_dimension_numbers<[2], [1], [1], [2], [0, 0, 0, 1, 1, 2], [0], [0]>} : vector<4x32x6xf32>, vector<4x6x8xf32>, vector<4x32x8xf32> -> vector<4x32x8xf32>
    %44 = vector.extract_strided_slice %43 {offsets = [0, 0, 0], sizes = [1, 32, 8], strides = [1, 1, 1]} : vector<4x32x8xf32> to vector<1x32x8xf32>
    %45 = vector.shape_cast %44 : vector<1x32x8xf32> to vector<32x8xf32>
    %46 = vector.extract_strided_slice %43 {offsets = [1, 0, 0], sizes = [1, 32, 8], strides = [1, 1, 1]} : vector<4x32x8xf32> to vector<1x32x8xf32>
    %47 = vector.shape_cast %46 : vector<1x32x8xf32> to vector<32x8xf32>
    %48 = vector.extract_strided_slice %43 {offsets = [2, 0, 0], sizes = [1, 32, 8], strides = [1, 1, 1]} : vector<4x32x8xf32> to vector<1x32x8xf32>
    %49 = vector.shape_cast %48 : vector<1x32x8xf32> to vector<32x8xf32>
    %50 = vector.extract_strided_slice %43 {offsets = [3, 0, 0], sizes = [1, 32, 8], strides = [1, 1, 1]} : vector<4x32x8xf32> to vector<1x32x8xf32>
    %51 = vector.shape_cast %50 : vector<1x32x8xf32> to vector<32x8xf32>
    %52 = tpu.concatenate %45, %47, %49, %51 in 1 : vector<32x8xf32>, vector<32x8xf32>, vector<32x8xf32>, vector<32x8xf32> -> vector<32x32xf32>
    %c0_9 = arith.constant 0 : index
    %c0_10 = arith.constant 0 : index
    %53 = vector.load %arg4[%c0_9, %c0_10] : memref<32x32xf32, #tpu.memory_space<vmem>>, vector<32x32xf32>
    tpu.vector_store %arg4[%c0_9, %c0_10], %52 {strides = array<i32>} : memref<32x32xf32, #tpu.memory_space<vmem>>, vector<32x32xf32>,
    return
  }
  func.func @transform_0(%arg0: i32) -> (i32, i32) {
    %c0_i32 = arith.constant 0 : i32
    %c0_i32_0 = arith.constant 0 : i32
    %c0_i32_1 = arith.constant 0 : i32
    return %c0_i32, %c0_i32_0 : i32, i32
  }
  func.func @transform_1(%arg0: i32) -> (i32, i32) {
    %c0_i32 = arith.constant 0 : i32
    %c0_i32_0 = arith.constant 0 : i32
    %c0_i32_1 = arith.constant 0 : i32
    return %c0_i32, %c0_i32_0 : i32, i32
  }
  func.func @transform_2(%arg0: i32) -> (i32, i32) {
    %c0_i32 = arith.constant 0 : i32
    %c0_i32_0 = arith.constant 0 : i32
    %c0_i32_1 = arith.constant 0 : i32
    return %c0_i32, %c0_i32_0 : i32, i32
  }
  func.func @transform_3(%arg0: i32) -> (i32, i32) {
    %c0_i32 = arith.constant 0 : i32
    %c0_i32_0 = arith.constant 0 : i32
    %c0_i32_1 = arith.constant 0 : i32
    return %c0_i32, %c0_i32_0 : i32, i32
  }
}

</mosaic_0001>

<llo_original>
// kernel: mha3_pallas.1
$region0: #{mha3_pallas.1}
  #allocation0 [shape = 'u32[]', space=smem, size = 0x4, offset = 0x4, fixed_abs, tag = 'smem constant byte address 0x4 - core index']
  #allocation1 [shape = 'u32[144,128]{1,0:T(1,128)}', space=vmem, size = 0x12000, scoped, tag = 'internal scratch']
  %s0 = inlined_call_operand.vmem [shape: f32[32,32], index: 0, kind: input, shape index: {}]
  %s1 = inlined_call_operand.vmem [shape: f32[6,32], index: 1, kind: input, shape index: {}]
  %s2 = inlined_call_operand.vmem [shape: f32[6,32], index: 2, kind: input, shape index: {}]
  %s3 = inlined_call_operand.hbm [shape: f32[32,32], index: 3, kind: output, shape index: {}]
  %s4 = sld [smem:[#allocation0]]
  $region22: #{mha3_pallas.1} parent=0
    _
  %s6 = ssub.s32 1, %s4
  %s7 = scalar_select 0, %s6, %s4
  $region1: #{mha3_pallas.1} parent=0
    #allocation2 [shape = 'u8[16384]{0}', space=vmem, size = 0x4000, scoped, tag = 'output window, operand 0, single buffered']
    #allocation3 [shape = 's32[1]{0}', space=sflag, size = 0x4, scoped, tag = 'scoped memory for mha3_pallas.1']
    %8 = vsyncpa [#allocation3], 0
    // Predicated region
    $region2: #{mha3_pallas.1} parent=1 // pred_check
      _
    $region3: #{mha3_pallas.1} parent=1 // pred_check_branch
      %10 = sbr.rel (0) target = $region5
    $region4: #{mha3_pallas.1} parent=1 // pred_region
      _
    $region5: #{mha3_pallas.1} parent=1 // pred_fallthru
      _
    // Predicated region
    $region6: #{mha3_pallas.1} parent=1 // pred_check
      _
    $region7: #{mha3_pallas.1} parent=1 // pred_check_branch
      %12 = sbr.rel (0) target = $region9
    $region8: #{mha3_pallas.1} parent=1 // pred_region
      _
    $region9: #{mha3_pallas.1} parent=1 // pred_fallthru
      _
    // Predicated region
    $region10: #{mha3_pallas.1} parent=1 // pred_check
      _
    $region11: #{mha3_pallas.1} parent=1 // pred_check_branch
      %14 = sbr.rel (0) target = $region13
    $region12: #{mha3_pallas.1} parent=1 // pred_region
      _
    $region13: #{mha3_pallas.1} parent=1 // pred_fallthru
      _
    %v15 = vld [vmem:[%s0] sm:$0xff]
    %v16 = vld [vmem:[%s0 + $0x8] sm:$0xff]
    %v17 = vld [vmem:[%s0 + $0x10] sm:$0xff]
    %v18 = vld [vmem:[%s0 + $0x18] sm:$0xff]
    %v19 = vmul.f32 %v15, 0.35355338
    %v20 = vmul.f32 %v16, 0.35355338
    %v21 = vmul.f32 %v17, 0.35355338
    %v22 = vmul.f32 %v18, 0.35355338
    %v23 = vld [vmem:[%s1] sm:$0x3f]
    %v24 = vld [vmem:[%s2] sm:$0x3f]
    %29 = vrot.lane.b32.xlu0 %v19, 120
    %v30 = vpop.permute.xlu0 %29
    %31 = vrot.lane.b32.xlu0 %v20, 120
    %v32 = vpop.permute.xlu0 %31
    %33 = vrot.lane.b32.xlu0 %v21, 120
    %v34 = vpop.permute.xlu0 %33
    %35 = vrot.lane.b32.xlu0 %v22, 120
    %v36 = vpop.permute.xlu0 %35
    %37 = vrot.lane.b32.xlu0 %v19, 112
    %v38 = vpop.permute.xlu0 %37
    %39 = vrot.lane.b32.xlu0 %v20, 112
    %v40 = vpop.permute.xlu0 %39
    %41 = vrot.lane.b32.xlu0 %v21, 112
    %v42 = vpop.permute.xlu0 %41
    %43 = vrot.lane.b32.xlu0 %v22, 112
    %v44 = vpop.permute.xlu0 %43
    %45 = vrot.lane.b32.xlu0 %v19, 104
    %v46 = vpop.permute.xlu0 %45
    %47 = vrot.lane.b32.xlu0 %v20, 104
    %v48 = vpop.permute.xlu0 %47
    %49 = vrot.lane.b32.xlu0 %v21, 104
    %v50 = vpop.permute.xlu0 %49
    %51 = vrot.lane.b32.xlu0 %v22, 104
    %v52 = vpop.permute.xlu0 %51
    %54 = vrot.lane.b32.xlu0 %v23, 120
    %v55 = vpop.permute.xlu0 %54
    %56 = vrot.lane.b32.xlu0 %v23, 112
    %v57 = vpop.permute.xlu0 %56
    %58 = vrot.lane.b32.xlu0 %v23, 104
    %v59 = vpop.permute.xlu0 %58
    %61 = vrot.lane.b32.xlu0 %v24, 120
    %v62 = vpop.permute.xlu0 %61
    %63 = vrot.lane.b32.xlu0 %v24, 112
    %v64 = vpop.permute.xlu0 %63
    %65 = vrot.lane.b32.xlu0 %v24, 104
    %v66 = vpop.permute.xlu0 %65
    %vm67 = vcmask 64512
    %v68 = vsel %vm67, %v19, 0
    %v70 = vsel %vm67, %v20, 0
    %v72 = vsel %vm67, %v21, 0
    %v74 = vsel %vm67, %v22, 0
    %v76 = vsel %vm67, %v23, 0
    %78 = vmatprep.subr.mxu0 0.0
    %79 = vmatpush1.xpose.msra.mxu0 %v76
    %80 = vmatprep.subr.mxu0 0.0
    %81 = vmatpush1.xpose.msra.mxu0 0.0
    %82 = vmatprep.subr.mxu0 0.0
    %83 = vmatpush1.xpose.msra.mxu0 0.0
    %84 = vmatprep.subr.mxu0 0.0
    %85 = vmatpush1.xpose.msra.mxu0 0.0
    %86 = vmatprep.subr.mxu0 0.0
    %87 = vmatpush1.xpose.msra.mxu0 0.0
    %88 = vmatprep.subr.mxu0 0.0
    %89 = vmatpush1.xpose.msra.mxu0 0.0
    %90 = vmatprep.subr.mxu0 0.0
    %91 = vmatpush1.xpose.msra.mxu0 0.0
    %92 = vmatprep.subr.mxu0 0.0
    %93 = vmatpush1.xpose.msra.mxu0 0.0
    %94 = vmatprep.subr.mxu0 0.0
    %95 = vmatpush1.xpose.msra.mxu0 0.0
    %96 = vmatprep.subr.mxu0 0.0
    %97 = vmatpush1.xpose.msra.mxu0 0.0
    %98 = vmatprep.subr.mxu0 0.0
    %99 = vmatpush1.xpose.msra.mxu0 0.0
    %100 = vmatprep.subr.mxu0 0.0
    %101 = vmatpush1.xpose.msra.mxu0 0.0
    %102 = vmatprep.subr.mxu0 0.0
    %103 = vmatpush1.xpose.msra.mxu0 0.0
    %104 = vmatprep.subr.mxu0 0.0
    %105 = vmatpush1.xpose.msra.mxu0 0.0
    %106 = vmatprep.subr.mxu0 0.0
    %107 = vmatpush1.xpose.msra.mxu0 0.0
    %108 = vmatprep.subr.mxu0 0.0
    %109 = vmatpush1.xpose.msra.mxu0 0.0
    %110 = vmatprep.subr.mxu0 0.0
    %111 = vmatpush1.xpose.msra.mxu0 0.0
    %112 = vmatprep.subr.mxu0 0.0
    %113 = vmatpush1.xpose.msra.mxu0 0.0
    %114 = vmatprep.subr.mxu0 0.0
    %115 = vmatpush1.xpose.msra.mxu0 0.0
    %116 = vmatprep.subr.mxu0 0.0
    %117 = vmatpush1.xpose.msra.mxu0 0.0
    %118 = vmatprep.subr.mxu0 0.0
    %119 = vmatpush1.xpose.msra.mxu0 0.0
    %120 = vmatprep.subr.mxu0 0.0
    %121 = vmatpush1.xpose.msra.mxu0 0.0
    %122 = vmatprep.subr.mxu0 0.0
    %123 = vmatpush1.xpose.msra.mxu0 0.0
    %124 = vmatprep.subr.mxu0 0.0
    %125 = vmatpush1.xpose.msra.mxu0 0.0
    %126 = vmatprep.subr.mxu0 0.0
    %127 = vmatpush1.xpose.msra.mxu0 0.0
    %128 = vmatprep.subr.mxu0 0.0
    %129 = vmatpush1.xpose.msra.mxu0 0.0
    %130 = vmatprep.subr.mxu0 0.0
    %131 = vmatpush1.xpose.msra.mxu0 0.0
    %132 = vmatprep.subr.mxu0 0.0
    %133 = vmatpush1.xpose.msra.mxu0 0.0
    %134 = vmatprep.subr.mxu0 0.0
    %135 = vmatpush1.xpose.msra.mxu0 0.0
    %136 = vmatprep.subr.mxu0 0.0
    %137 = vmatpush1.xpose.msra.mxu0 0.0
    %138 = vmatprep.subr.mxu0 0.0
    %139 = vmatpush1.xpose.msra.mxu0 0.0
    %140 = vmatprep.subr.mxu0 0.0
    %141 = vmatpush1.xpose.msra.mxu0 0.0
    %142 = vmatprep.mubr.f32.mxu0 0.0
    %143 = vmatmul.mubr.f32.gmra.mrb[0].mxu0 %v68
    %v144 = vpop.f32.mrb[0].mxu0
    %v145 = vadd.f32 0.0, %v144
    %v146 = vpop.f32.mrb[0].mxu0
    %147 = vmatprep.mubr.f32.mxu0 0.0
    %148 = vmatmul.mubr.f32.gmra.mrb[0].mxu0 %v70
    %v149 = vpop.f32.mrb[0].mxu0
    %v150 = vadd.f32 0.0, %v149
    %v151 = vpop.f32.mrb[0].mxu0
    %152 = vmatprep.mubr.f32.mxu0 0.0
    %153 = vmatmul.mubr.f32.gmra.mrb[0].mxu0 %v72
    %v154 = vpop.f32.mrb[0].mxu0
    %v155 = vadd.f32 0.0, %v154
    %v156 = vpop.f32.mrb[0].mxu0
    %157 = vmatprep.mubr.f32.mxu0 0.0
    %158 = vmatmul.mubr.f32.gmra.mrb[0].mxu0 %v74
    %v159 = vpop.f32.mrb[0].mxu0
    %v160 = vadd.f32 0.0, %v159
    %v161 = vpop.f32.mrb[0].mxu0
    %162 = vdwg.mxu0
    %v163 = vsel %vm67, %v30, 0
    %v165 = vsel %vm67, %v32, 0
    %v167 = vsel %vm67, %v34, 0
    %v169 = vsel %vm67, %v36, 0
    %v171 = vsel %vm67, %v55, 0
    %173 = vmatprep.subr.mxu0 0.0
    %174 = vmatpush1.xpose.msra.mxu0 %v171
    %175 = vmatprep.subr.mxu0 0.0
    %176 = vmatpush1.xpose.msra.mxu0 0.0
    %177 = vmatprep.subr.mxu0 0.0
    %178 = vmatpush1.xpose.msra.mxu0 0.0
    %179 = vmatprep.subr.mxu0 0.0
    %180 = vmatpush1.xpose.msra.mxu0 0.0
    %181 = vmatprep.subr.mxu0 0.0
    %182 = vmatpush1.xpose.msra.mxu0 0.0
    %183 = vmatprep.subr.mxu0 0.0
    %184 = vmatpush1.xpose.msra.mxu0 0.0
    %185 = vmatprep.subr.mxu0 0.0
    %186 = vmatpush1.xpose.msra.mxu0 0.0
    %187 = vmatprep.subr.mxu0 0.0
    %188 = vmatpush1.xpose.msra.mxu0 0.0
    %189 = vmatprep.subr.mxu0 0.0
    %190 = vmatpush1.xpose.msra.mxu0 0.0
    %191 = vmatprep.subr.mxu0 0.0
    %192 = vmatpush1.xpose.msra.mxu0 0.0
    %193 = vmatprep.subr.mxu0 0.0
    %194 = vmatpush1.xpose.msra.mxu0 0.0
    %195 = vmatprep.subr.mxu0 0.0
    %196 = vmatpush1.xpose.msra.mxu0 0.0
    %197 = vmatprep.subr.mxu0 0.0
    %198 = vmatpush1.xpose.msra.mxu0 0.0
    %199 = vmatprep.subr.mxu0 0.0
    %200 = vmatpush1.xpose.msra.mxu0 0.0
    %201 = vmatprep.subr.mxu0 0.0
    %202 = vmatpush1.xpose.msra.mxu0 0.0
    %203 = vmatprep.subr.mxu0 0.0
    %204 = vmatpush1.xpose.msra.mxu0 0.0
    %205 = vmatprep.subr.mxu0 0.0
    %206 = vmatpush1.xpose.msra.mxu0 0.0
    %207 = vmatprep.subr.mxu0 0.0
    %208 = vmatpush1.xpose.msra.mxu0 0.0
    %209 = vmatprep.subr.mxu0 0.0
    %210 = vmatpush1.xpose.msra.mxu0 0.0
    %211 = vmatprep.subr.mxu0 0.0
    %212 = vmatpush1.xpose.msra.mxu0 0.0
    %213 = vmatprep.subr.mxu0 0.0
    %214 = vmatpush1.xpose.msra.mxu0 0.0
    %215 = vmatprep.subr.mxu0 0.0
    %216 = vmatpush1.xpose.msra.mxu0 0.0
    %217 = vmatprep.subr.mxu0 0.0
    %218 = vmatpush1.xpose.msra.mxu0 0.0
    %219 = vmatprep.subr.mxu0 0.0
    %220 = vmatpush1.xpose.msra.mxu0 0.0
    %221 = vmatprep.subr.mxu0 0.0
    %222 = vmatpush1.xpose.msra.mxu0 0.0
    %223 = vmatprep.subr.mxu0 0.0
    %224 = vmatpush1.xpose.msra.mxu0 0.0
    %225 = vmatprep.subr.mxu0 0.0
    %226 = vmatpush1.xpose.msra.mxu0 0.0
    %227 = vmatprep.subr.mxu0 0.0
    %228 = vmatpush1.xpose.msra.mxu0 0.0
    %229 = vmatprep.subr.mxu0 0.0
    %230 = vmatpush1.xpose.msra.mxu0 0.0
    %231 = vmatprep.subr.mxu0 0.0
    %232 = vmatpush1.xpose.msra.mxu0 0.0
    %233 = vmatprep.subr.mxu0 0.0
    %234 = vmatpush1.xpose.msra.mxu0 0.0
    %235 = vmatprep.subr.mxu0 0.0
    %236 = vmatpush1.xpose.msra.mxu0 0.0
    %237 = vmatprep.mubr.f32.mxu0 0.0
    %238 = vmatmul.mubr.f32.gmra.mrb[0].mxu0 %v163
    %v239 = vpop.f32.mrb[0].mxu0
    %v240 = vadd.f32 0.0, %v239
    %v241 = vpop.f32.mrb[0].mxu0
    %242 = vmatprep.mubr.f32.mxu0 0.0
    %243 = vmatmul.mubr.f32.gmra.mrb[0].mxu0 %v165
    %v244 = vpop.f32.mrb[0].mxu0
    %v245 = vadd.f32 0.0, %v244
    %v246 = vpop.f32.mrb[0].mxu0
    %247 = vmatprep.mubr.f32.mxu0 0.0
    %248 = vmatmul.mubr.f32.gmra.mrb[0].mxu0 %v167
    %v249 = vpop.f32.mrb[0].mxu0
    %v250 = vadd.f32 0.0, %v249
    %v251 = vpop.f32.mrb[0].mxu0
    %252 = vmatprep.mubr.f32.mxu0 0.0
    %253 = vmatmul.mubr.f32.gmra.mrb[0].mxu0 %v169
    %v254 = vpop.f32.mrb[0].mxu0
    %v255 = vadd.f32 0.0, %v254
    %v256 = vpop.f32.mrb[0].mxu0
    %257 = vdwg.mxu0
    %v258 = vsel %vm67, %v38, 0
    %v260 = vsel %vm67, %v40, 0
    %v262 = vsel %vm67, %v42, 0
    %v264 = vsel %vm67, %v44, 0
    %v266 = vsel %vm67, %v57, 0
    %268 = vmatprep.subr.mxu0 0.0
    %269 = vmatpush1.xpose.msra.mxu0 %v266
    %270 = vmatprep.subr.mxu0 0.0
    %271 = vmatpush1.xpose.msra.mxu0 0.0
    %272 = vmatprep.subr.mxu0 0.0
    %273 = vmatpush1.xpose.msra.mxu0 0.0
    %274 = vmatprep.subr.mxu0 0.0
    %275 = vmatpush1.xpose.msra.mxu0 0.0
    %276 = vmatprep.subr.mxu0 0.0
    %277 = vmatpush1.xpose.msra.mxu0 0.0
    %278 = vmatprep.subr.mxu0 0.0
    %279 = vmatpush1.xpose.msra.mxu0 0.0
    %280 = vmatprep.subr.mxu0 0.0
    %281 = vmatpush1.xpose.msra.mxu0 0.0
    %282 = vmatprep.subr.mxu0 0.0
    %283 = vmatpush1.xpose.msra.mxu0 0.0
    %284 = vmatprep.subr.mxu0 0.0
    %285 = vmatpush1.xpose.msra.mxu0 0.0
    %286 = vmatprep.subr.mxu0 0.0
    %287 = vmatpush1.xpose.msra.mxu0 0.0
    %288 = vmatprep.subr.mxu0 0.0
    %289 = vmatpush1.xpose.msra.mxu0 0.0
    %290 = vmatprep.subr.mxu0 0.0
    %291 = vmatpush1.xpose.msra.mxu0 0.0
    %292 = vmatprep.subr.mxu0 0.0
    %293 = vmatpush1.xpose.msra.mxu0 0.0
    %294 = vmatprep.subr.mxu0 0.0
    %295 = vmatpush1.xpose.msra.mxu0 0.0
    %296 = vmatprep.subr.mxu0 0.0
    %297 = vmatpush1.xpose.msra.mxu0 0.0
    %298 = vmatprep.subr.mxu0 0.0
    %299 = vmatpush1.xpose.msra.mxu0 0.0
    %300 = vmatprep.subr.mxu0 0.0
    %301 = vmatpush1.xpose.msra.mxu0 0.0
    %302 = vmatprep.subr.mxu0 0.0
    %303 = vmatpush1.xpose.msra.mxu0 0.0
    %304 = vmatprep.subr.mxu0 0.0
    %305 = vmatpush1.xpose.msra.mxu0 0.0
    %306 = vmatprep.subr.mxu0 0.0
    %307 = vmatpush1.xpose.msra.mxu0 0.0
    %308 = vmatprep.subr.mxu0 0.0
    %309 = vmatpush1.xpose.msra.mxu0 0.0
    %310 = vmatprep.subr.mxu0 0.0
    %311 = vmatpush1.xpose.msra.mxu0 0.0
    %312 = vmatprep.subr.mxu0 0.0
    %313 = vmatpush1.xpose.msra.mxu0 0.0
    %314 = vmatprep.subr.mxu0 0.0
    %315 = vmatpush1.xpose.msra.mxu0 0.0
    %316 = vmatprep.subr.mxu0 0.0
    %317 = vmatpush1.xpose.msra.mxu0 0.0
    %318 = vmatprep.subr.mxu0 0.0
    %319 = vmatpush1.xpose.msra.mxu0 0.0
    %320 = vmatprep.subr.mxu0 0.0
    %321 = vmatpush1.xpose.msra.mxu0 0.0
    %322 = vmatprep.subr.mxu0 0.0
    %323 = vmatpush1.xpose.msra.mxu0 0.0
    %324 = vmatprep.subr.mxu0 0.0
    %325 = vmatpush1.xpose.msra.mxu0 0.0
    %326 = vmatprep.subr.mxu0 0.0
    %327 = vmatpush1.xpose.msra.mxu0 0.0
    %328 = vmatprep.subr.mxu0 0.0
    %329 = vmatpush1.xpose.msra.mxu0 0.0
    %330 = vmatprep.subr.mxu0 0.0
    %331 = vmatpush1.xpose.msra.mxu0 0.0
    %332 = vmatprep.mubr.f32.mxu0 0.0
    %333 = vmatmul.mubr.f32.gmra.mrb[0].mxu0 %v258
    %v334 = vpop.f32.mrb[0].mxu0
    %v335 = vadd.f32 0.0, %v334
    %v336 = vpop.f32.mrb[0].mxu0
    %337 = vmatprep.mubr.f32.mxu0 0.0
    %338 = vmatmul.mubr.f32.gmra.mrb[0].mxu0 %v260
    %v339 = vpop.f32.mrb[0].mxu0
    %v340 = vadd.f32 0.0, %v339
    %v341 = vpop.f32.mrb[0].mxu0
    %342 = vmatprep.mubr.f32.mxu0 0.0
    %343 = vmatmul.mubr.f32.gmra.mrb[0].mxu0 %v262
    %v344 = vpop.f32.mrb[0].mxu0
    %v345 = vadd.f32 0.0, %v344
    %v346 = vpop.f32.mrb[0].mxu0
    %347 = vmatprep.mubr.f32.mxu0 0.0
    %348 = vmatmul.mubr.f32.gmra.mrb[0].mxu0 %v264
    %v349 = vpop.f32.mrb[0].mxu0
    %v350 = vadd.f32 0.0, %v349
    %v351 = vpop.f32.mrb[0].mxu0
    %352 = vdwg.mxu0
    %v353 = vsel %vm67, %v46, 0
    %v355 = vsel %vm67, %v48, 0
    %v357 = vsel %vm67, %v50, 0
    %v359 = vsel %vm67, %v52, 0
    %v361 = vsel %vm67, %v59, 0
    %363 = vmatprep.subr.mxu0 0.0
    %364 = vmatpush1.xpose.msra.mxu0 %v361
    %365 = vmatprep.subr.mxu0 0.0
    %366 = vmatpush1.xpose.msra.mxu0 0.0
    %367 = vmatprep.subr.mxu0 0.0
    %368 = vmatpush1.xpose.msra.mxu0 0.0
    %369 = vmatprep.subr.mxu0 0.0
    %370 = vmatpush1.xpose.msra.mxu0 0.0
    %371 = vmatprep.subr.mxu0 0.0
    %372 = vmatpush1.xpose.msra.mxu0 0.0
    %373 = vmatprep.subr.mxu0 0.0
    %374 = vmatpush1.xpose.msra.mxu0 0.0
    %375 = vmatprep.subr.mxu0 0.0
    %376 = vmatpush1.xpose.msra.mxu0 0.0
    %377 = vmatprep.subr.mxu0 0.0
    %378 = vmatpush1.xpose.msra.mxu0 0.0
    %379 = vmatprep.subr.mxu0 0.0
    %380 = vmatpush1.xpose.msra.mxu0 0.0
    %381 = vmatprep.subr.mxu0 0.0
    %382 = vmatpush1.xpose.msra.mxu0 0.0
    %383 = vmatprep.subr.mxu0 0.0
    %384 = vmatpush1.xpose.msra.mxu0 0.0
    %385 = vmatprep.subr.mxu0 0.0
    %386 = vmatpush1.xpose.msra.mxu0 0.0
    %387 = vmatprep.subr.mxu0 0.0
    %388 = vmatpush1.xpose.msra.mxu0 0.0
    %389 = vmatprep.subr.mxu0 0.0
    %390 = vmatpush1.xpose.msra.mxu0 0.0
    %391 = vmatprep.subr.mxu0 0.0
    %392 = vmatpush1.xpose.msra.mxu0 0.0
    %393 = vmatprep.subr.mxu0 0.0
    %394 = vmatpush1.xpose.msra.mxu0 0.0
    %395 = vmatprep.subr.mxu0 0.0
    %396 = vmatpush1.xpose.msra.mxu0 0.0
    %397 = vmatprep.subr.mxu0 0.0
    %398 = vmatpush1.xpose.msra.mxu0 0.0
    %399 = vmatprep.subr.mxu0 0.0
    %400 = vmatpush1.xpose.msra.mxu0 0.0
    %401 = vmatprep.subr.mxu0 0.0
    %402 = vmatpush1.xpose.msra.mxu0 0.0
    %403 = vmatprep.subr.mxu0 0.0
    %404 = vmatpush1.xpose.msra.mxu0 0.0
    %405 = vmatprep.subr.mxu0 0.0
    %406 = vmatpush1.xpose.msra.mxu0 0.0
    %407 = vmatprep.subr.mxu0 0.0
    %408 = vmatpush1.xpose.msra.mxu0 0.0
    %409 = vmatprep.subr.mxu0 0.0
    %410 = vmatpush1.xpose.msra.mxu0 0.0
    %411 = vmatprep.subr.mxu0 0.0
    %412 = vmatpush1.xpose.msra.mxu0 0.0
    %413 = vmatprep.subr.mxu0 0.0
    %414 = vmatpush1.xpose.msra.mxu0 0.0
    %415 = vmatprep.subr.mxu0 0.0
    %416 = vmatpush1.xpose.msra.mxu0 0.0
    %417 = vmatprep.subr.mxu0 0.0
    %418 = vmatpush1.xpose.msra.mxu0 0.0
    %419 = vmatprep.subr.mxu0 0.0
    %420 = vmatpush1.xpose.msra.mxu0 0.0
    %421 = vmatprep.subr.mxu0 0.0
    %422 = vmatpush1.xpose.msra.mxu0 0.0
    %423 = vmatprep.subr.mxu0 0.0
    %424 = vmatpush1.xpose.msra.mxu0 0.0
    %425 = vmatprep.subr.mxu0 0.0
    %426 = vmatpush1.xpose.msra.mxu0 0.0
    %427 = vmatprep.mubr.f32.mxu0 0.0
    %428 = vmatmul.mubr.f32.gmra.mrb[0].mxu0 %v353
    %v429 = vpop.f32.mrb[0].mxu0
    %v430 = vadd.f32 0.0, %v429
    %v431 = vpop.f32.mrb[0].mxu0
    %432 = vmatprep.mubr.f32.mxu0 0.0
    %433 = vmatmul.mubr.f32.gmra.mrb[0].mxu0 %v355
    %v434 = vpop.f32.mrb[0].mxu0
    %v435 = vadd.f32 0.0, %v434
    %v436 = vpop.f32.mrb[0].mxu0
    %437 = vmatprep.mubr.f32.mxu0 0.0
    %438 = vmatmul.mubr.f32.gmra.mrb[0].mxu0 %v357
    %v439 = vpop.f32.mrb[0].mxu0
    %v440 = vadd.f32 0.0, %v439
    %v441 = vpop.f32.mrb[0].mxu0
    %442 = vmatprep.mubr.f32.mxu0 0.0
    %443 = vmatmul.mubr.f32.gmra.mrb[0].mxu0 %v359
    %v444 = vpop.f32.mrb[0].mxu0
    %v445 = vadd.f32 0.0, %v444
    %v446 = vpop.f32.mrb[0].mxu0
    %447 = vdwg.mxu0
    %vm448 = vcmask 48128
    %v449 = vsel %vm448, %v145, -inf
    %450 = vmax.xlane.f32.xlu0 %v449
    %v451 = vpop.xlane.xlu0 %450
    %v452 = vsel %vm448, %v150, -inf
    %453 = vmax.xlane.f32.xlu0 %v452
    %v454 = vpop.xlane.xlu0 %453
    %v455 = vsel %vm448, %v155, -inf
    %456 = vmax.xlane.f32.xlu0 %v455
    %v457 = vpop.xlane.xlu0 %456
    %v458 = vsel %vm448, %v160, -inf
    %459 = vmax.xlane.f32.xlu0 %v458
    %v460 = vpop.xlane.xlu0 %459
    %v461 = vsel %vm448, %v240, -inf
    %462 = vmax.xlane.f32.xlu0 %v461
    %v463 = vpop.xlane.xlu0 %462
    %v464 = vsel %vm448, %v245, -inf
    %465 = vmax.xlane.f32.xlu0 %v464
    %v466 = vpop.xlane.xlu0 %465
    %v467 = vsel %vm448, %v250, -inf
    %468 = vmax.xlane.f32.xlu0 %v467
    %v469 = vpop.xlane.xlu0 %468
    %v470 = vsel %vm448, %v255, -inf
    %471 = vmax.xlane.f32.xlu0 %v470
    %v472 = vpop.xlane.xlu0 %471
    %v473 = vsel %vm448, %v335, -inf
    %474 = vmax.xlane.f32.xlu0 %v473
    %v475 = vpop.xlane.xlu0 %474
    %v476 = vsel %vm448, %v340, -inf
    %477 = vmax.xlane.f32.xlu0 %v476
    %v478 = vpop.xlane.xlu0 %477
    %v479 = vsel %vm448, %v345, -inf
    %480 = vmax.xlane.f32.xlu0 %v479
    %v481 = vpop.xlane.xlu0 %480
    %v482 = vsel %vm448, %v350, -inf
    %483 = vmax.xlane.f32.xlu0 %v482
    %v484 = vpop.xlane.xlu0 %483
    %v485 = vsel %vm448, %v430, -inf
    %486 = vmax.xlane.f32.xlu0 %v485
    %v487 = vpop.xlane.xlu0 %486
    %v488 = vsel %vm448, %v435, -inf
    %489 = vmax.xlane.f32.xlu0 %v488
    %v490 = vpop.xlane.xlu0 %489
    %v491 = vsel %vm448, %v440, -inf
    %492 = vmax.xlane.f32.xlu0 %v491
    %v493 = vpop.xlane.xlu0 %492
    %v494 = vsel %vm448, %v445, -inf
    %495 = vmax.xlane.f32.xlu0 %v494
    %v496 = vpop.xlane.xlu0 %495
    %v497 = vsub.f32 %v145, %v451
    %v498 = vsub.f32 %v150, %v454
    %v499 = vsub.f32 %v155, %v457
    %v500 = vsub.f32 %v160, %v460
    %v501 = vsub.f32 %v240, %v463
    %v502 = vsub.f32 %v245, %v466
    %v503 = vsub.f32 %v250, %v469
    %v504 = vsub.f32 %v255, %v472
    %v505 = vsub.f32 %v335, %v475
    %v506 = vsub.f32 %v340, %v478
    %v507 = vsub.f32 %v345, %v481
    %v508 = vsub.f32 %v350, %v484
    %v509 = vsub.f32 %v430, %v487
    %v510 = vsub.f32 %v435, %v490
    %v511 = vsub.f32 %v440, %v493
    %v512 = vsub.f32 %v445, %v496
    %v513 = vmul.f32 %v497, 1.442695
    %v514 = vpow.pop %v513
    %v515 = vmul.f32 %v498, 1.442695
    %v516 = vpow.pop %v515
    %v517 = vmul.f32 %v499, 1.442695
    %v518 = vpow.pop %v517
    %v519 = vmul.f32 %v500, 1.442695
    %v520 = vpow.pop %v519
    %v521 = vmul.f32 %v501, 1.442695
    %v522 = vpow.pop %v521
    %v523 = vmul.f32 %v502, 1.442695
    %v524 = vpow.pop %v523
    %v525 = vmul.f32 %v503, 1.442695
    %v526 = vpow.pop %v525
    %v527 = vmul.f32 %v504, 1.442695
    %v528 = vpow.pop %v527
    %v529 = vmul.f32 %v505, 1.442695
    %v530 = vpow.pop %v529
    %v531 = vmul.f32 %v506, 1.442695
    %v532 = vpow.pop %v531
    %v533 = vmul.f32 %v507, 1.442695
    %v534 = vpow.pop %v533
    %v535 = vmul.f32 %v508, 1.442695
    %v536 = vpow.pop %v535
    %v537 = vmul.f32 %v509, 1.442695
    %v538 = vpow.pop %v537
    %v539 = vmul.f32 %v510, 1.442695
    %v540 = vpow.pop %v539
    %v541 = vmul.f32 %v511, 1.442695
    %v542 = vpow.pop %v541
    %v543 = vmul.f32 %v512, 1.442695
    %v544 = vpow.pop %v543
    %v545 = vsel %vm448, %v514, 0.0
    %546 = vadd.xlane.f32.xlu0 %v545
    %v547 = vpop.xlane.xlu0 %546
    %v548 = vsel %vm448, %v516, 0.0
    %549 = vadd.xlane.f32.xlu0 %v548
    %v550 = vpop.xlane.xlu0 %549
    %v551 = vsel %vm448, %v518, 0.0
    %552 = vadd.xlane.f32.xlu0 %v551
    %v553 = vpop.xlane.xlu0 %552
    %v554 = vsel %vm448, %v520, 0.0
    %555 = vadd.xlane.f32.xlu0 %v554
    %v556 = vpop.xlane.xlu0 %555
    %v557 = vsel %vm448, %v522, 0.0
    %558 = vadd.xlane.f32.xlu0 %v557
    %v559 = vpop.xlane.xlu0 %558
    %v560 = vsel %vm448, %v524, 0.0
    %561 = vadd.xlane.f32.xlu0 %v560
    %v562 = vpop.xlane.xlu0 %561
    %v563 = vsel %vm448, %v526, 0.0
    %564 = vadd.xlane.f32.xlu0 %v563
    %v565 = vpop.xlane.xlu0 %564
    %v566 = vsel %vm448, %v528, 0.0
    %567 = vadd.xlane.f32.xlu0 %v566
    %v568 = vpop.xlane.xlu0 %567
    %v569 = vsel %vm448, %v530, 0.0
    %570 = vadd.xlane.f32.xlu0 %v569
    %v571 = vpop.xlane.xlu0 %570
    %v572 = vsel %vm448, %v532, 0.0
    %573 = vadd.xlane.f32.xlu0 %v572
    %v574 = vpop.xlane.xlu0 %573
    %v575 = vsel %vm448, %v534, 0.0
    %576 = vadd.xlane.f32.xlu0 %v575
    %v577 = vpop.xlane.xlu0 %576
    %v578 = vsel %vm448, %v536, 0.0
    %579 = vadd.xlane.f32.xlu0 %v578
    %v580 = vpop.xlane.xlu0 %579
    %v581 = vsel %vm448, %v538, 0.0
    %582 = vadd.xlane.f32.xlu0 %v581
    %v583 = vpop.xlane.xlu0 %582
    %v584 = vsel %vm448, %v540, 0.0
    %585 = vadd.xlane.f32.xlu0 %v584
    %v586 = vpop.xlane.xlu0 %585
    %v587 = vsel %vm448, %v542, 0.0
    %588 = vadd.xlane.f32.xlu0 %v587
    %v589 = vpop.xlane.xlu0 %588
    %v590 = vsel %vm448, %v544, 0.0
    %591 = vadd.xlane.f32.xlu0 %v590
    %v592 = vpop.xlane.xlu0 %591
    %v593 = vrcp.pop %v547
    %v594 = vrcp.pop %v550
    %v595 = vrcp.pop %v553
    %v596 = vrcp.pop %v556
    %v597 = vrcp.pop %v559
    %v598 = vrcp.pop %v562
    %v599 = vrcp.pop %v565
    %v600 = vrcp.pop %v568
    %v601 = vrcp.pop %v571
    %v602 = vrcp.pop %v574
    %v603 = vrcp.pop %v577
    %v604 = vrcp.pop %v580
    %v605 = vrcp.pop %v583
    %v606 = vrcp.pop %v586
    %v607 = vrcp.pop %v589
    %v608 = vrcp.pop %v592
    %v609 = vmul.f32 %v514, %v593
    %v610 = vmul.f32 %v516, %v594
    %v611 = vmul.f32 %v518, %v595
    %v612 = vmul.f32 %v520, %v596
    %v613 = vmul.f32 %v522, %v597
    %v614 = vmul.f32 %v524, %v598
    %v615 = vmul.f32 %v526, %v599
    %v616 = vmul.f32 %v528, %v600
    %v617 = vmul.f32 %v530, %v601
    %v618 = vmul.f32 %v532, %v602
    %v619 = vmul.f32 %v534, %v603
    %v620 = vmul.f32 %v536, %v604
    %v621 = vmul.f32 %v538, %v605
    %v622 = vmul.f32 %v540, %v606
    %v623 = vmul.f32 %v542, %v607
    %v624 = vmul.f32 %v544, %v608
    %v626 = vsel %vm448, %v609, 0
    %v629 = vsel %vm448, %v610, 0
    %v632 = vsel %vm448, %v611, 0
    %v635 = vsel %vm448, %v612, 0
    %vm637 = vcmask 1045504
    %v638 = vsel %vm637, %v24, 0
    %640 = vmatprep.subr.mxu0 0.0
    %641 = vmatpush1.msra.mxu0 %v638
    %642 = vmatprep.subr.mxu0 0.0
    %643 = vmatpush1.msra.mxu0 0.0
    %644 = vmatprep.subr.mxu0 0.0
    %645 = vmatpush1.msra.mxu0 0.0
    %646 = vmatprep.subr.mxu0 0.0
    %647 = vmatpush1.msra.mxu0 0.0
    %648 = vmatprep.subr.mxu0 0.0
    %649 = vmatpush1.msra.mxu0 0.0
    %650 = vmatprep.subr.mxu0 0.0
    %651 = vmatpush1.msra.mxu0 0.0
    %652 = vmatprep.subr.mxu0 0.0
    %653 = vmatpush1.msra.mxu0 0.0
    %654 = vmatprep.subr.mxu0 0.0
    %655 = vmatpush1.msra.mxu0 0.0
    %656 = vmatprep.subr.mxu0 0.0
    %657 = vmatpush1.msra.mxu0 0.0
    %658 = vmatprep.subr.mxu0 0.0
    %659 = vmatpush1.msra.mxu0 0.0
    %660 = vmatprep.subr.mxu0 0.0
    %661 = vmatpush1.msra.mxu0 0.0
    %662 = vmatprep.subr.mxu0 0.0
    %663 = vmatpush1.msra.mxu0 0.0
    %664 = vmatprep.subr.mxu0 0.0
    %665 = vmatpush1.msra.mxu0 0.0
    %666 = vmatprep.subr.mxu0 0.0
    %667 = vmatpush1.msra.mxu0 0.0
    %668 = vmatprep.subr.mxu0 0.0
    %669 = vmatpush1.msra.mxu0 0.0
    %670 = vmatprep.subr.mxu0 0.0
    %671 = vmatpush1.msra.mxu0 0.0
    %672 = vmatprep.subr.mxu0 0.0
    %673 = vmatpush1.msra.mxu0 0.0
    %674 = vmatprep.subr.mxu0 0.0
    %675 = vmatpush1.msra.mxu0 0.0
    %676 = vmatprep.subr.mxu0 0.0
    %677 = vmatpush1.msra.mxu0 0.0
    %678 = vmatprep.subr.mxu0 0.0
    %679 = vmatpush1.msra.mxu0 0.0
    %680 = vmatprep.subr.mxu0 0.0
    %681 = vmatpush1.msra.mxu0 0.0
    %682 = vmatprep.subr.mxu0 0.0
    %683 = vmatpush1.msra.mxu0 0.0
    %684 = vmatprep.subr.mxu0 0.0
    %685 = vmatpush1.msra.mxu0 0.0
    %686 = vmatprep.subr.mxu0 0.0
    %687 = vmatpush1.msra.mxu0 0.0
    %688 = vmatprep.subr.mxu0 0.0
    %689 = vmatpush1.msra.mxu0 0.0
    %690 = vmatprep.subr.mxu0 0.0
    %691 = vmatpush1.msra.mxu0 0.0
    %692 = vmatprep.subr.mxu0 0.0
    %693 = vmatpush1.msra.mxu0 0.0
    %694 = vmatprep.subr.mxu0 0.0
    %695 = vmatpush1.msra.mxu0 0.0
    %696 = vmatprep.subr.mxu0 0.0
    %697 = vmatpush1.msra.mxu0 0.0
    %698 = vmatprep.subr.mxu0 0.0
    %699 = vmatpush1.msra.mxu0 0.0
    %700 = vmatprep.subr.mxu0 0.0
    %701 = vmatpush1.msra.mxu0 0.0
    %702 = vmatprep.subr.mxu0 0.0
    %703 = vmatpush1.msra.mxu0 0.0
    %704 = vmatprep.mubr.f32.mxu0 0.0
    %705 = vmatmul.mubr.f32.gmra.mrb[0].mxu0 %v626
    %v706 = vpop.f32.mrb[0].mxu0
    %v707 = vadd.f32 0.0, %v706
    %v708 = vpop.f32.mrb[0].mxu0
    %709 = vmatprep.mubr.f32.mxu0 0.0
    %710 = vmatmul.mubr.f32.gmra.mrb[0].mxu0 %v629
    %v711 = vpop.f32.mrb[0].mxu0
    %v712 = vadd.f32 0.0, %v711
    %v713 = vpop.f32.mrb[0].mxu0
    %714 = vmatprep.mubr.f32.mxu0 0.0
    %715 = vmatmul.mubr.f32.gmra.mrb[0].mxu0 %v632
    %v716 = vpop.f32.mrb[0].mxu0
    %v717 = vadd.f32 0.0, %v716
    %v718 = vpop.f32.mrb[0].mxu0
    %719 = vmatprep.mubr.f32.mxu0 0.0
    %720 = vmatmul.mubr.f32.gmra.mrb[0].mxu0 %v635
    %v721 = vpop.f32.mrb[0].mxu0
    %v722 = vadd.f32 0.0, %v721
    %v723 = vpop.f32.mrb[0].mxu0
    %724 = vdwg.mxu0
    %v726 = vsel %vm448, %v613, 0
    %v729 = vsel %vm448, %v614, 0
    %v732 = vsel %vm448, %v615, 0
    %v735 = vsel %vm448, %v616, 0
    %v737 = vsel %vm637, %v62, 0
    %739 = vmatprep.subr.mxu0 0.0
    %740 = vmatpush1.msra.mxu0 %v737
    %741 = vmatprep.subr.mxu0 0.0
    %742 = vmatpush1.msra.mxu0 0.0
    %743 = vmatprep.subr.mxu0 0.0
    %744 = vmatpush1.msra.mxu0 0.0
    %745 = vmatprep.subr.mxu0 0.0
    %746 = vmatpush1.msra.mxu0 0.0
    %747 = vmatprep.subr.mxu0 0.0
    %748 = vmatpush1.msra.mxu0 0.0
    %749 = vmatprep.subr.mxu0 0.0
    %750 = vmatpush1.msra.mxu0 0.0
    %751 = vmatprep.subr.mxu0 0.0
    %752 = vmatpush1.msra.mxu0 0.0
    %753 = vmatprep.subr.mxu0 0.0
    %754 = vmatpush1.msra.mxu0 0.0
    %755 = vmatprep.subr.mxu0 0.0
    %756 = vmatpush1.msra.mxu0 0.0
    %757 = vmatprep.subr.mxu0 0.0
    %758 = vmatpush1.msra.mxu0 0.0
    %759 = vmatprep.subr.mxu0 0.0
    %760 = vmatpush1.msra.mxu0 0.0
    %761 = vmatprep.subr.mxu0 0.0
    %762 = vmatpush1.msra.mxu0 0.0
    %763 = vmatprep.subr.mxu0 0.0
    %764 = vmatpush1.msra.mxu0 0.0
    %765 = vmatprep.subr.mxu0 0.0
    %766 = vmatpush1.msra.mxu0 0.0
    %767 = vmatprep.subr.mxu0 0.0
    %768 = vmatpush1.msra.mxu0 0.0
    %769 = vmatprep.subr.mxu0 0.0
    %770 = vmatpush1.msra.mxu0 0.0
    %771 = vmatprep.subr.mxu0 0.0
    %772 = vmatpush1.msra.mxu0 0.0
    %773 = vmatprep.subr.mxu0 0.0
    %774 = vmatpush1.msra.mxu0 0.0
    %775 = vmatprep.subr.mxu0 0.0
    %776 = vmatpush1.msra.mxu0 0.0
    %777 = vmatprep.subr.mxu0 0.0
    %778 = vmatpush1.msra.mxu0 0.0
    %779 = vmatprep.subr.mxu0 0.0
    %780 = vmatpush1.msra.mxu0 0.0
    %781 = vmatprep.subr.mxu0 0.0
    %782 = vmatpush1.msra.mxu0 0.0
    %783 = vmatprep.subr.mxu0 0.0
    %784 = vmatpush1.msra.mxu0 0.0
    %785 = vmatprep.subr.mxu0 0.0
    %786 = vmatpush1.msra.mxu0 0.0
    %787 = vmatprep.subr.mxu0 0.0
    %788 = vmatpush1.msra.mxu0 0.0
    %789 = vmatprep.subr.mxu0 0.0
    %790 = vmatpush1.msra.mxu0 0.0
    %791 = vmatprep.subr.mxu0 0.0
    %792 = vmatpush1.msra.mxu0 0.0
    %793 = vmatprep.subr.mxu0 0.0
    %794 = vmatpush1.msra.mxu0 0.0
    %795 = vmatprep.subr.mxu0 0.0
    %796 = vmatpush1.msra.mxu0 0.0
    %797 = vmatprep.subr.mxu0 0.0
    %798 = vmatpush1.msra.mxu0 0.0
    %799 = vmatprep.subr.mxu0 0.0
    %800 = vmatpush1.msra.mxu0 0.0
    %801 = vmatprep.subr.mxu0 0.0
    %802 = vmatpush1.msra.mxu0 0.0
    %803 = vmatprep.mubr.f32.mxu0 0.0
    %804 = vmatmul.mubr.f32.gmra.mrb[0].mxu0 %v726
    %v805 = vpop.f32.mrb[0].mxu0
    %v806 = vadd.f32 0.0, %v805
    %v807 = vpop.f32.mrb[0].mxu0
    %808 = vmatprep.mubr.f32.mxu0 0.0
    %809 = vmatmul.mubr.f32.gmra.mrb[0].mxu0 %v729
    %v810 = vpop.f32.mrb[0].mxu0
    %v811 = vadd.f32 0.0, %v810
    %v812 = vpop.f32.mrb[0].mxu0
    %813 = vmatprep.mubr.f32.mxu0 0.0
    %814 = vmatmul.mubr.f32.gmra.mrb[0].mxu0 %v732
    %v815 = vpop.f32.mrb[0].mxu0
    %v816 = vadd.f32 0.0, %v815
    %v817 = vpop.f32.mrb[0].mxu0
    %818 = vmatprep.mubr.f32.mxu0 0.0
    %819 = vmatmul.mubr.f32.gmra.mrb[0].mxu0 %v735
    %v820 = vpop.f32.mrb[0].mxu0
    %v821 = vadd.f32 0.0, %v820
    %v822 = vpop.f32.mrb[0].mxu0
    %823 = vdwg.mxu0
    %v825 = vsel %vm448, %v617, 0
    %v828 = vsel %vm448, %v618, 0
    %v831 = vsel %vm448, %v619, 0
    %v834 = vsel %vm448, %v620, 0
    %v836 = vsel %vm637, %v64, 0
    %838 = vmatprep.subr.mxu0 0.0
    %839 = vmatpush1.msra.mxu0 %v836
    %840 = vmatprep.subr.mxu0 0.0
    %841 = vmatpush1.msra.mxu0 0.0
    %842 = vmatprep.subr.mxu0 0.0
    %843 = vmatpush1.msra.mxu0 0.0
    %844 = vmatprep.subr.mxu0 0.0
    %845 = vmatpush1.msra.mxu0 0.0
    %846 = vmatprep.subr.mxu0 0.0
    %847 = vmatpush1.msra.mxu0 0.0
    %848 = vmatprep.subr.mxu0 0.0
    %849 = vmatpush1.msra.mxu0 0.0
    %850 = vmatprep.subr.mxu0 0.0
    %851 = vmatpush1.msra.mxu0 0.0
    %852 = vmatprep.subr.mxu0 0.0
    %853 = vmatpush1.msra.mxu0 0.0
    %854 = vmatprep.subr.mxu0 0.0
    %855 = vmatpush1.msra.mxu0 0.0
    %856 = vmatprep.subr.mxu0 0.0
    %857 = vmatpush1.msra.mxu0 0.0
    %858 = vmatprep.subr.mxu0 0.0
    %859 = vmatpush1.msra.mxu0 0.0
    %860 = vmatprep.subr.mxu0 0.0
    %861 = vmatpush1.msra.mxu0 0.0
    %862 = vmatprep.subr.mxu0 0.0
    %863 = vmatpush1.msra.mxu0 0.0
    %864 = vmatprep.subr.mxu0 0.0
    %865 = vmatpush1.msra.mxu0 0.0
    %866 = vmatprep.subr.mxu0 0.0
    %867 = vmatpush1.msra.mxu0 0.0
    %868 = vmatprep.subr.mxu0 0.0
    %869 = vmatpush1.msra.mxu0 0.0
    %870 = vmatprep.subr.mxu0 0.0
    %871 = vmatpush1.msra.mxu0 0.0
    %872 = vmatprep.subr.mxu0 0.0
    %873 = vmatpush1.msra.mxu0 0.0
    %874 = vmatprep.subr.mxu0 0.0
    %875 = vmatpush1.msra.mxu0 0.0
    %876 = vmatprep.subr.mxu0 0.0
    %877 = vmatpush1.msra.mxu0 0.0
    %878 = vmatprep.subr.mxu0 0.0
    %879 = vmatpush1.msra.mxu0 0.0
    %880 = vmatprep.subr.mxu0 0.0
    %881 = vmatpush1.msra.mxu0 0.0
    %882 = vmatprep.subr.mxu0 0.0
    %883 = vmatpush1.msra.mxu0 0.0
    %884 = vmatprep.subr.mxu0 0.0
    %885 = vmatpush1.msra.mxu0 0.0
    %886 = vmatprep.subr.mxu0 0.0
    %887 = vmatpush1.msra.mxu0 0.0
    %888 = vmatprep.subr.mxu0 0.0
    %889 = vmatpush1.msra.mxu0 0.0
    %890 = vmatprep.subr.mxu0 0.0
    %891 = vmatpush1.msra.mxu0 0.0
    %892 = vmatprep.subr.mxu0 0.0
    %893 = vmatpush1.msra.mxu0 0.0
    %894 = vmatprep.subr.mxu0 0.0
    %895 = vmatpush1.msra.mxu0 0.0
    %896 = vmatprep.subr.mxu0 0.0
    %897 = vmatpush1.msra.mxu0 0.0
    %898 = vmatprep.subr.mxu0 0.0
    %899 = vmatpush1.msra.mxu0 0.0
    %900 = vmatprep.subr.mxu0 0.0
    %901 = vmatpush1.msra.mxu0 0.0
    %902 = vmatprep.mubr.f32.mxu0 0.0
    %903 = vmatmul.mubr.f32.gmra.mrb[0].mxu0 %v825
    %v904 = vpop.f32.mrb[0].mxu0
    %v905 = vadd.f32 0.0, %v904
    %v906 = vpop.f32.mrb[0].mxu0
    %907 = vmatprep.mubr.f32.mxu0 0.0
    %908 = vmatmul.mubr.f32.gmra.mrb[0].mxu0 %v828
    %v909 = vpop.f32.mrb[0].mxu0
    %v910 = vadd.f32 0.0, %v909
    %v911 = vpop.f32.mrb[0].mxu0
    %912 = vmatprep.mubr.f32.mxu0 0.0
    %913 = vmatmul.mubr.f32.gmra.mrb[0].mxu0 %v831
    %v914 = vpop.f32.mrb[0].mxu0
    %v915 = vadd.f32 0.0, %v914
    %v916 = vpop.f32.mrb[0].mxu0
    %917 = vmatprep.mubr.f32.mxu0 0.0
    %918 = vmatmul.mubr.f32.gmra.mrb[0].mxu0 %v834
    %v919 = vpop.f32.mrb[0].mxu0
    %v920 = vadd.f32 0.0, %v919
    %v921 = vpop.f32.mrb[0].mxu0
    %922 = vdwg.mxu0
    %v924 = vsel %vm448, %v621, 0
    %v927 = vsel %vm448, %v622, 0
    %v930 = vsel %vm448, %v623, 0
    %v933 = vsel %vm448, %v624, 0
    %v935 = vsel %vm637, %v66, 0
    %937 = vmatprep.subr.mxu0 0.0
    %938 = vmatpush1.msra.mxu0 %v935
    %939 = vmatprep.subr.mxu0 0.0
    %940 = vmatpush1.msra.mxu0 0.0
    %941 = vmatprep.subr.mxu0 0.0
    %942 = vmatpush1.msra.mxu0 0.0
    %943 = vmatprep.subr.mxu0 0.0
    %944 = vmatpush1.msra.mxu0 0.0
    %945 = vmatprep.subr.mxu0 0.0
    %946 = vmatpush1.msra.mxu0 0.0
    %947 = vmatprep.subr.mxu0 0.0
    %948 = vmatpush1.msra.mxu0 0.0
    %949 = vmatprep.subr.mxu0 0.0
    %950 = vmatpush1.msra.mxu0 0.0
    %951 = vmatprep.subr.mxu0 0.0
    %952 = vmatpush1.msra.mxu0 0.0
    %953 = vmatprep.subr.mxu0 0.0
    %954 = vmatpush1.msra.mxu0 0.0
    %955 = vmatprep.subr.mxu0 0.0
    %956 = vmatpush1.msra.mxu0 0.0
    %957 = vmatprep.subr.mxu0 0.0
    %958 = vmatpush1.msra.mxu0 0.0
    %959 = vmatprep.subr.mxu0 0.0
    %960 = vmatpush1.msra.mxu0 0.0
    %961 = vmatprep.subr.mxu0 0.0
    %962 = vmatpush1.msra.mxu0 0.0
    %963 = vmatprep.subr.mxu0 0.0
    %964 = vmatpush1.msra.mxu0 0.0
    %965 = vmatprep.subr.mxu0 0.0
    %966 = vmatpush1.msra.mxu0 0.0
    %967 = vmatprep.subr.mxu0 0.0
    %968 = vmatpush1.msra.mxu0 0.0
    %969 = vmatprep.subr.mxu0 0.0
    %970 = vmatpush1.msra.mxu0 0.0
    %971 = vmatprep.subr.mxu0 0.0
    %972 = vmatpush1.msra.mxu0 0.0
    %973 = vmatprep.subr.mxu0 0.0
    %974 = vmatpush1.msra.mxu0 0.0
    %975 = vmatprep.subr.mxu0 0.0
    %976 = vmatpush1.msra.mxu0 0.0
    %977 = vmatprep.subr.mxu0 0.0
    %978 = vmatpush1.msra.mxu0 0.0
    %979 = vmatprep.subr.mxu0 0.0
    %980 = vmatpush1.msra.mxu0 0.0
    %981 = vmatprep.subr.mxu0 0.0
    %982 = vmatpush1.msra.mxu0 0.0
    %983 = vmatprep.subr.mxu0 0.0
    %984 = vmatpush1.msra.mxu0 0.0
    %985 = vmatprep.subr.mxu0 0.0
    %986 = vmatpush1.msra.mxu0 0.0
    %987 = vmatprep.subr.mxu0 0.0
    %988 = vmatpush1.msra.mxu0 0.0
    %989 = vmatprep.subr.mxu0 0.0
    %990 = vmatpush1.msra.mxu0 0.0
    %991 = vmatprep.subr.mxu0 0.0
    %992 = vmatpush1.msra.mxu0 0.0
    %993 = vmatprep.subr.mxu0 0.0
    %994 = vmatpush1.msra.mxu0 0.0
    %995 = vmatprep.subr.mxu0 0.0
    %996 = vmatpush1.msra.mxu0 0.0
    %997 = vmatprep.subr.mxu0 0.0
    %998 = vmatpush1.msra.mxu0 0.0
    %999 = vmatprep.subr.mxu0 0.0
    %1000 = vmatpush1.msra.mxu0 0.0
    %1001 = vmatprep.mubr.f32.mxu0 0.0
    %1002 = vmatmul.mubr.f32.gmra.mrb[0].mxu0 %v924
    %v1003 = vpop.f32.mrb[0].mxu0
    %v1004 = vadd.f32 0.0, %v1003
    %v1005 = vpop.f32.mrb[0].mxu0
    %1006 = vmatprep.mubr.f32.mxu0 0.0
    %1007 = vmatmul.mubr.f32.gmra.mrb[0].mxu0 %v927
    %v1008 = vpop.f32.mrb[0].mxu0
    %v1009 = vadd.f32 0.0, %v1008
    %v1010 = vpop.f32.mrb[0].mxu0
    %1011 = vmatprep.mubr.f32.mxu0 0.0
    %1012 = vmatmul.mubr.f32.gmra.mrb[0].mxu0 %v930
    %v1013 = vpop.f32.mrb[0].mxu0
    %v1014 = vadd.f32 0.0, %v1013
    %v1015 = vpop.f32.mrb[0].mxu0
    %1016 = vmatprep.mubr.f32.mxu0 0.0
    %1017 = vmatmul.mubr.f32.gmra.mrb[0].mxu0 %v933
    %v1018 = vpop.f32.mrb[0].mxu0
    %v1019 = vadd.f32 0.0, %v1018
    %v1020 = vpop.f32.mrb[0].mxu0
    %1021 = vdwg.mxu0
    %1026 = vrot.lane.b32.xlu0 %v806, 8
    %v1027 = vpop.permute.xlu0 %1026
    %1028 = vrot.lane.b32.xlu0 %v811, 8
    %v1029 = vpop.permute.xlu0 %1028
    %1030 = vrot.lane.b32.xlu0 %v816, 8
    %v1031 = vpop.permute.xlu0 %1030
    %1032 = vrot.lane.b32.xlu0 %v821, 8
    %v1033 = vpop.permute.xlu0 %1032
    %1042 = vrot.lane.b32.xlu0 %v905, 16
    %v1043 = vpop.permute.xlu0 %1042
    %1044 = vrot.lane.b32.xlu0 %v910, 16
    %v1045 = vpop.permute.xlu0 %1044
    %1046 = vrot.lane.b32.xlu0 %v915, 16
    %v1047 = vpop.permute.xlu0 %1046
    %1048 = vrot.lane.b32.xlu0 %v920, 16
    %v1049 = vpop.permute.xlu0 %1048
    %1058 = vrot.lane.b32.xlu0 %v1004, 24
    %v1059 = vpop.permute.xlu0 %1058
    %1060 = vrot.lane.b32.xlu0 %v1009, 24
    %v1061 = vpop.permute.xlu0 %1060
    %1062 = vrot.lane.b32.xlu0 %v1014, 24
    %v1063 = vpop.permute.xlu0 %1062
    %1064 = vrot.lane.b32.xlu0 %v1019, 24
    %v1065 = vpop.permute.xlu0 %1064
    %v1070 = vsel %vm67, %v707, %v1027
    %v1071 = vsel %vm67, %v712, %v1029
    %v1072 = vsel %vm67, %v717, %v1031
    %v1073 = vsel %vm67, %v722, %v1033
    %vm1074 = vcmask 130048
    %v1075 = vsel %vm1074, %v1070, %v1043
    %v1076 = vsel %vm1074, %v1071, %v1045
    %v1077 = vsel %vm1074, %v1072, %v1047
    %v1078 = vsel %vm1074, %v1073, %v1049
    %vm1079 = vcmask 195584
    %v1080 = vsel %vm1079, %v1075, %v1059
    %v1081 = vsel %vm1079, %v1076, %v1061
    %v1082 = vsel %vm1079, %v1077, %v1063
    %v1083 = vsel %vm1079, %v1078, %v1065
    %vm1084 = vcmask 261120
    %1085 = vst.msk [vmem:[#allocation2] sm:$0xff] %vm1084, %v1080
    %1086 = vst.msk [vmem:[#allocation2 + $0x8] sm:$0xff] %vm1084, %v1081
    %1087 = vst.msk [vmem:[#allocation2 + $0x10] sm:$0xff] %vm1084, %v1082
    %1088 = vst.msk [vmem:[#allocation2 + $0x18] sm:$0xff] %vm1084, %v1083
    // Predicated region
    $region14: #{mha3_pallas.1} parent=1 // pred_check
      _
    $region15: #{mha3_pallas.1} parent=1 // pred_check_branch
      %1090 = sbr.rel (0) target = $region17
    $region16: #{mha3_pallas.1} parent=1 // pred_region
      %s1092 = ssub.s32 512, 512
      %1093 = vsyncadd [#allocation3], %s1092
      %s1094 = sshll.u32 [#allocation2], 4
      %s1095 = int_to_ptr.vmem [resolvable:$true] %s1094
      %1100 = dma.vmem_to_hbm [thread:$0]  %s1095, 512, %s3, [#allocation3], 128, 128, 8
    $region17: #{mha3_pallas.1} parent=1 // pred_fallthru
      _
    // Predicated region
    $region18: #{mha3_pallas.1} parent=1 // pred_check
      _
    $region19: #{mha3_pallas.1} parent=1 // pred_check_branch
      %1102 = sbr.rel (0) target = $region21
    $region20: #{mha3_pallas.1} parent=1 // pred_region
      %1103 = dma.done [#allocation3], 512
    $region21: #{mha3_pallas.1} parent=1 // pred_fallthru
      _
    %1104 = vsyncpa [#allocation3], 1

</llo_original>
